<compile_context>
chip_gen: v6e
topology: v6e:2x2x1
jax: 0.10.0
libtpu: 0.0.40
codegen_flags: <defaults>
</compile_context>

<pallas_src>
import jax
import jax.numpy as jnp
from jax import lax
from jax.experimental import pallas as pl
from jax.experimental.pallas import tpu as pltpu

_LANE = 128


# --------------------------------------------------------------------------
# small helpers
# --------------------------------------------------------------------------
def _ceil_to(x, m):
    return ((x + m - 1) // m) * m


def _pad2(x, rows, cols, dtype):
    x = jnp.asarray(x)
    out = jnp.zeros((rows, cols), dtype)
    return out.at[: x.shape[0], : x.shape[1]].set(x.astype(dtype))


def _vmem_budget_bytes():
    """Per-generation VMEM limit: 3/4 of physical capacity (headroom for
    double-buffered DMAs and Mosaic internal scratch). Falls back to a v7x-safe
    value if the query is unavailable."""
    cap = 64 * 1024 * 1024
    try:
        info = pltpu.get_tpu_info()
        cap = int(getattr(info, "vmem_capacity_bytes", cap))
    except Exception:
        pass
    return (cap * 3) // 4


def _plan_tiles(n):
    """Row/K tile sizes for the streaming path. Last-dim (lane) tiles must be
    128-divisible or equal to the padded extent."""
    if n >= 2048:
        t = 512
    elif n >= 512:
        t = 256
    elif n >= 128:
        t = 128
    else:
        t = 16
    n_pad = _ceil_to(max(n, t), t)
    tm = t
    tk = t if t >= 128 else n_pad  # small graphs: full-K blocks (lane rule)
    return n_pad, tm, tk


def _pad_params(layer_params, w_out, b_out, fin_pad_first, c_pad):
    """Pad per-layer W/b and split W_out into per-layer row slices (all
    128-aligned, so no in-kernel slicing of weights is ever needed)."""
    params = []
    off = 0
    in_pad = fin_pad_first
    for (w, b) in layer_params:
        fin, fout = w.shape
        fout_pad = _ceil_to(fout, _LANE)
        w_p = _pad2(w, in_pad, fout_pad, jnp.bfloat16)
        b_p = _pad2(b.reshape(1, fout), 1, fout_pad, jnp.float32)
        wout_p = _pad2(w_out[off:off + fout, :], fout_pad, c_pad, jnp.bfloat16)
        params.append((w_p, b_p, wout_p, fout_pad))
        off += fout
        in_pad = fout_pad
    bout_p = _pad2(b_out.reshape(1, -1), 1, c_pad, jnp.float32)
    return params, bout_p


# --------------------------------------------------------------------------
# fused resident-A kernel (small / medium graphs: A fits the VMEM budget)
# --------------------------------------------------------------------------
def _make_fused_kernel(num_layers):
    def kernel(a_ref, x_ref, *refs):
        o_ref = refs[-1]
        bout_ref = refs[-2]
        layer_refs = refs[:-2]          # (w, b, wout) triplets per layer

        a = a_ref[...]                  # bf16 [Np, Np], loaded ONCE, resident
        n = a.shape[0]
        c_pad = o_ref.shape[1]

        # In-kernel symmetric-norm degrees: exact 0/1 row sums via an MXU
        # ones-matvec (bf16 operands, f32 accumulation).  No second HBM pass
        # over A and no f32 [N, N] temporary.
        ones = jnp.ones((n, _LANE), dtype=a.dtype)
        deg = jnp.dot(a, ones, preferred_element_type=jnp.float32)[:, :1]
        dinv = lax.rsqrt(jnp.maximum(deg, 1.0))                 # [n, 1] f32

        # Hoist the [n,1]->[n,F] broadcast out of the layer loop (JAX does not
        # CSE broadcast_in_dim); JKNet hidden widths are uniform.
        hdims = [layer_refs[3 * l + 1].shape[1] for l in range(num_layers)]
        dinv_h = (jnp.broadcast_to(dinv, (n, hdims[0]))
                  if len(set(hdims)) == 1 else dinv)

        # Source-side scaling applied on the cheaper side of the transform:
        #   dinv * (H @ W) == (dinv * H) @ W
        m = (x_ref[...] * dinv).astype(jnp.bfloat16)

        # Accumulator for H_cat @ W_out, built layer by layer (no concat).
        proj = jnp.zeros((n, c_pad), jnp.float32)
        for l in range(num_layers):
            w_ref = layer_refs[3 * l]
            b_ref = layer_refs[3 * l + 1]
            wout_ref = layer_refs[3 * l + 2]

            msg = jnp.dot(m, w_ref[...], preferred_element_type=jnp.float32)
            agg = jnp.dot(a, msg.astype(jnp.bfloat16),
                          preferred_element_type=jnp.float32)
            h = jnp.maximum(agg * dinv_h + b_ref[...], 0.0)     # f32 epilogue
            proj = proj + jnp.dot(h.astype(jnp.bfloat16), wout_ref[...],
                                  preferred_element_type=jnp.float32)
            if l + 1 < num_layers:
                m = (h * dinv_h).astype(jnp.bfloat16)           # next layer's scaled input

        # (A @ H_cat) @ W_out == A @ (H_cat @ W_out): contract only C columns.
        out = jnp.dot(a, proj.astype(jnp.bfloat16),
                      preferred_element_type=jnp.float32) + bout_ref[...]
        o_ref[...] = out.astype(o_ref.dtype)

    return kernel


def _forward_fused(a_raw, feats, params, bout_p, n, c, n_pad, fin_pad, c_pad,
                   vmem_limit):
    a_p = _pad2(a_raw, n_pad, n_pad, jnp.bfloat16)
    x_p = _pad2(feats, n_pad, fin_pad, jnp.bfloat16)
    num_layers = len(params)

    args = [a_p, x_p]
    in_specs = [pl.BlockSpec((n_pad, n_pad), lambda i: (0, 0)),
                pl.BlockSpec((n_pad, fin_pad), lambda i: (0, 0))]
    for (w_p, b_p, wout_p, _) in params:
        args += [w_p, b_p, wout_p]
        in_specs += [pl.BlockSpec(w_p.shape, lambda i: (0, 0)),
                     pl.BlockSpec(b_p.shape, lambda i: (0, 0)),
                     pl.BlockSpec(wout_p.shape, lambda i: (0, 0))]
    args.append(bout_p)
    in_specs.append(pl.BlockSpec(bout_p.shape, lambda i: (0, 0)))

    y = pl.pallas_call(
        _make_fused_kernel(num_layers),
        out_shape=jax.ShapeDtypeStruct((n_pad, c_pad), jnp.float32),
        grid=(1,),
        in_specs=in_specs,
        out_specs=pl.BlockSpec((n_pad, c_pad), lambda i: (0, 0)),
        compiler_params=pltpu.CompilerParams(
            dimension_semantics=("arbitrary",),
            vmem_limit_bytes=vmem_limit),
    )(*args)
    return y[:n, :c]


# --------------------------------------------------------------------------
# streaming row-tiled path (large graphs, megacore-parallel, A in (tm,tk) blocks)
# --------------------------------------------------------------------------
def _transform_kernel(x_ref, dinv_ref, w_ref, m_ref):
    # M_1 = dinv * (X @ W_1)  (row-local, perfectly parallel over row tiles)
    xw = jnp.dot(x_ref[...], w_ref[...], preferred_element_type=jnp.float32)
    m_ref[...] = (xw * dinv_ref[...]).astype(m_ref.dtype)


def _make_layer_kernel(has_next):
    """One GraphConv layer over a (row 'parallel', K 'arbitrary') grid.
    Consumes the source-scaled messages M_l = dinv*(H_{l-1} @ W_l) and emits,
    per row tile: the layer's contribution H_l @ Wout_l to the output
    projection and (if not last) the next layer's messages M_{l+1}."""
    def kernel(*refs):
        if has_next:
            (a_ref, m_ref, dinv_ref, b_ref, wout_ref, wnext_ref,
             p_ref, mnext_ref, acc_ref) = refs
        else:
            a_ref, m_ref, dinv_ref, b_ref, wout_ref, p_ref, acc_ref = refs
            wnext_ref = mnext_ref = None
        k = pl.program_id(1)

        @pl.when(k == 0)
        def _():
            acc_ref[...] = jnp.zeros_like(acc_ref)

        acc_ref[...] += jnp.dot(a_ref[...], m_ref[...],
                                preferred_element_type=jnp.float32)

        @pl.when(k == pl.num_programs(1) - 1)
        def _():
            dinv = dinv_ref[...]
            h = jnp.maximum(acc_ref[...] * dinv + b_ref[...], 0.0)  # f32 epilogue
            p_ref[...] = jnp.dot(h.astype(jnp.bfloat16), wout_ref[...],
                                 preferred_element_type=jnp.float32)
            if has_next:
                mnext_ref[...] = jnp.dot(
                    (h * dinv).astype(jnp.bfloat16), wnext_ref[...],
                    preferred_element_type=jnp.float32).astype(mnext_ref.dtype)

    return kernel


def _aggregate_kernel(a_ref, proj_ref, bout_ref, o_ref, acc_ref):
    # y = A @ proj + b_out  (raw adjacency copy_u/sum + Linear bias)
    k = pl.program_id(1)

    @pl.when(k == 0)
    def _():
        acc_ref[...] = jnp.zeros_like(acc_ref)

    acc_ref[...] += jnp.dot(a_ref[...], proj_ref[...],
                            preferred_element_type=jnp.float32)

    @pl.when(k == pl.num_programs(1) - 1)
    def _():
        o_ref[...] = (acc_ref[...] + bout_ref[...]).astype(o_ref.dtype)


def _forward_tiled(a_raw, feats, params, bout_p, n, c, fin_pad, c_pad,
                   vmem_limit):
    n_pad, tm, tk = _plan_tiles(n)
    grid_rows = n_pad // tm
    grid_k = n_pad // tk

    a_p = _pad2(a_raw, n_pad, n_pad, jnp.bfloat16)
    x_p = _pad2(feats, n_pad, fin_pad, jnp.bfloat16)
    # Column-side dinv needs every row before any row tile runs -> one
    # wrapper-side XLA reduce (see TODO(synk) at the top).
    deg = jnp.maximum(jnp.sum(a_raw.astype(jnp.float32), axis=1), 1.0)
    dinv_p = _pad2(lax.rsqrt(deg).reshape(-1, 1), n_pad, 1, jnp.float32)

    num_layers = len(params)

    # 1) first message tensor  M_1 = dinv * (X @ W_1)   (row-parallel)
    w0_p, _, _, f0_pad = params[0]
    m = pl.pallas_call(
        _transform_kernel,
        out_shape=jax.ShapeDtypeStruct((n_pad, f0_pad), jnp.bfloat16),
        grid=(grid_rows,),
        in_specs=[pl.BlockSpec((tm, fin_pad), lambda i: (i, 0)),
                  pl.BlockSpec((tm, 1), lambda i: (i, 0)),
                  pl.BlockSpec((fin_pad, f0_pad), lambda i: (0, 0))],
        out_specs=pl.BlockSpec((tm, f0_pad), lambda i: (i, 0)),
        compiler_params=pltpu.CompilerParams(
            dimension_semantics=("parallel",),
            vmem_limit_bytes=vmem_limit),
    )(x_p, dinv_p, w0_p)

    # 2) GraphConv layers; proj = sum_l H_l @ Wout_l accumulated across calls.
    proj = jnp.zeros((n_pad, c_pad), jnp.float32)
    for l in range(num_layers):
        w_p, b_p, wout_p, f_pad = params[l]
        has_next = l + 1 < num_layers

        inputs = [a_p, m, dinv_p, b_p, wout_p]
        in_specs = [pl.BlockSpec((tm, tk), lambda i, k: (i, k)),
                    pl.BlockSpec((tk, f_pad), lambda i, k: (k, 0)),
                    pl.BlockSpec((tm, 1), lambda i, k: (i, 0)),
                    pl.BlockSpec((1, f_pad), lambda i, k: (0, 0)),
                    pl.BlockSpec((f_pad, c_pad), lambda i, k: (0, 0))]
        out_shape = [jax.ShapeDtypeStruct((n_pad, c_pad), jnp.float32)]
        out_specs = [pl.BlockSpec((tm, c_pad), lambda i, k: (i, 0))]
        if has_next:
            wnext_p = params[l + 1][0]
            fnext_pad = params[l + 1][3]
            inputs.append(wnext_p)
            in_specs.append(pl.BlockSpec((f_pad, fnext_pad), lambda i, k: (0, 0)))
            out_shape.append(jax.ShapeDtypeStruct((n_pad, fnext_pad), jnp.bfloat16))
            out_specs.append(pl.BlockSpec((tm, fnext_pad), lambda i, k: (i, 0)))

        res = pl.pallas_call(
            _make_layer_kernel(has_next),
            out_shape=tuple(out_shape),
            grid=(grid_rows, grid_k),
            in_specs=in_specs,
            out_specs=tuple(out_specs),
            scratch_shapes=[pltpu.VMEM((tm, f_pad), jnp.float32)],
            compiler_params=pltpu.CompilerParams(
                dimension_semantics=("parallel", "arbitrary"),
                vmem_limit_bytes=vmem_limit),
        )(*inputs)
        if not isinstance(res, (tuple, list)):
            res = (res,)
        proj = proj + res[0]
        if has_next:
            m = res[1]

    # 3) final unnormalized aggregation + output bias:  y = A @ proj + b_out
    y = pl.pallas_call(
        _aggregate_kernel,
        out_shape=jax.ShapeDtypeStruct((n_pad, c_pad), jnp.float32),
        grid=(grid_rows, grid_k),
        in_specs=[pl.BlockSpec((tm, tk), lambda i, k: (i, k)),
                  pl.BlockSpec((tk, c_pad), lambda i, k: (k, 0)),
                  pl.BlockSpec((1, c_pad), lambda i, k: (0, 0))],
        out_specs=pl.BlockSpec((tm, c_pad), lambda i, k: (i, 0)),
        scratch_shapes=[pltpu.VMEM((tm, c_pad), jnp.float32)],
        compiler_params=pltpu.CompilerParams(
            dimension_semantics=("parallel", "arbitrary"),
            vmem_limit_bytes=vmem_limit),
    )(a_p, proj.astype(jnp.bfloat16), bout_p)
    return y[:n, :c]


# --------------------------------------------------------------------------
# dispatch wrapper
# --------------------------------------------------------------------------
def jknet_forward(a_raw, feats, layer_params, w_out, b_out, *, force_tiled=False):
    """a_raw: [N, N] 0/1 adjacency; feats: [N, in_feats];
    layer_params: [(W, b), ...]; w_out: [cat_dim, n_classes] (= Linear.weight.T);
    b_out: [n_classes]."""
    n = a_raw.shape[0]
    c = w_out.shape[1]
    fin_pad = _ceil_to(feats.shape[1], _LANE)
    c_pad = _ceil_to(c, _LANE)
    vmem_limit = _vmem_budget_bytes()

    params, bout_p = _pad_params(layer_params, w_out, b_out, fin_pad, c_pad)

    # Resident (single fused call) only when bf16 A + activations + weights fit
    # the per-generation VMEM budget with slack; otherwise stream A in tiles.
    n8 = _ceil_to(max(n, 8), 8)
    maxf = max([fin_pad, c_pad] + [p[3] for p in params])
    weight_bytes = sum(int(p[0].size) * 2 + int(p[1].size) * 4 + int(p[2].size) * 2
                       for p in params)
    resident_bytes = 2 * n8 * n8 + 10 * n8 * maxf * 4 + weight_bytes
    if (not force_tiled) and resident_bytes <= vmem_limit // 2:
        return _forward_fused(a_raw, feats, params, bout_p, n, c, n8,
                              fin_pad, c_pad, vmem_limit)
    return _forward_tiled(a_raw, feats, params, bout_p, n, c,
                          fin_pad, c_pad, vmem_limit)


# --------------------------------------------------------------------------
# f32 reference (pure JAX)
# --------------------------------------------------------------------------
def _reference(a_raw, feats, layer_params, w_out, b_out):
    deg = jnp.maximum(a_raw.sum(axis=1), 1.0)
    dinv = lax.rsqrt(deg)
    a_norm = a_raw * dinv[:, None] * dinv[None, :]
    h = feats
    feat_lst = []
    for (w, b) in layer_params:
        h = jnp.maximum(a_norm @ (h @ w) + b, 0.0)
        feat_lst.append(h)
    out = jnp.concatenate(feat_lst, axis=-1)
    return (a_raw @ out) @ w_out + b_out


if __name__ == "__main__":
    # Small deterministic problem: 32 nodes, in_feats=16, n_hidden=32,
    # n_layers=1 (-> 2 GraphConv layers), n_classes=8, mode='cat'.
    N, in_feats, n_hidden, n_classes, n_layers = 32, 16, 32, 8, 1

    key = jax.random.PRNGKey(0)
    k_adj, k_x, k_w0, k_w1, k_wo, k_bo = jax.random.split(key, 6)

    # Deterministic undirected graph without self-loops.
    upper = jax.random.bernoulli(k_adj, p=0.2, shape=(N, N)).astype(jnp.float32)
    a_raw = jnp.triu(upper, k=1)
    a_raw = a_raw + a_raw.T

    feats = jax.random.normal(k_x, (N, in_feats), dtype=jnp.float32)

    def xavier(k, fin, fout):
        s = jnp.sqrt(6.0 / (fin + fout))
        return jax.random.uniform(k, (fin, fout), jnp.float32, -s, s)

    layer_params = [
        (xavier(k_w0, in_feats, n_hidden), jnp.zeros((n_hidden,), jnp.float32)),
        (xavier(k_w1, n_hidden, n_hidden), jnp.zeros((n_hidden,), jnp.float32)),
    ]
    cat_dim = n_hidden * (n_layers + 1)
    w_out = xavier(k_wo, cat_dim, n_classes)      # stored as [in, out] = Linear.weight.T
    b_out = jax.random.uniform(k_bo, (n_classes,), jnp.float32, -0.1, 0.1)

    # Resident fused path (auto-selected at this size) ...
    y_fused = jax.block_until_ready(
        jknet_forward(a_raw, feats, layer_params, w_out, b_out))
    # ... and the streaming row-tiled path, forced, to exercise both regimes.
    y_tiled = jax.block_until_ready(
        jknet_forward(a_raw, feats, layer_params, w_out, b_out, force_tiled=True))

    y_ref = _reference(a_raw, feats, layer_params, w_out, b_out)
    assert y_fused.shape == (N, n_classes)
    assert y_tiled.shape == (N, n_classes)
    # bf16 matmul operands (f32 accumulation) vs. an all-f32 reference:
    # tolerance at the bf16 level, per the review's correctness note.
    assert jnp.allclose(y_fused, y_ref, atol=5e-2, rtol=5e-2), \
        float(jnp.max(jnp.abs(y_fused - y_ref)))
    assert jnp.allclose(y_tiled, y_ref, atol=5e-2, rtol=5e-2), \
        float(jnp.max(jnp.abs(y_tiled - y_ref)))

    print("KERNEL_OK")
</pallas_src>

<mosaic_0001>
module attributes {stable_mosaic.version = 11 : i64} {
  func.func @kernel(%arg0: i32, %arg1: memref<32x32xbf16, #tpu.memory_space<vmem>>, %arg2: memref<32x128xbf16, #tpu.memory_space<vmem>>, %arg3: memref<128x128xbf16, #tpu.memory_space<vmem>>, %arg4: memref<1x128xf32, #tpu.memory_space<vmem>>, %arg5: memref<128x128xbf16, #tpu.memory_space<vmem>>, %arg6: memref<128x128xbf16, #tpu.memory_space<vmem>>, %arg7: memref<1x128xf32, #tpu.memory_space<vmem>>, %arg8: memref<128x128xbf16, #tpu.memory_space<vmem>>, %arg9: memref<1x128xf32, #tpu.memory_space<vmem>>, %arg10: memref<32x128xf32, #tpu.memory_space<vmem>>) attributes {dimension_semantics = [#tpu.dimension_semantics<arbitrary>], iteration_bounds = array<i64: 1>, scalar_prefetch = 0 : i64, scratch_operands = 0 : i64, tpu.core_type = #tpu.core_type<tc>, window_params = [{pipeline_mode = #tpu.pipeline_mode<synchronous>, transform_indices = @transform_0, window_bounds = array<i64: 32, 32>}, {pipeline_mode = #tpu.pipeline_mode<synchronous>, transform_indices = @transform_1, window_bounds = array<i64: 32, 128>}, {pipeline_mode = #tpu.pipeline_mode<synchronous>, transform_indices = @transform_2, window_bounds = array<i64: 128, 128>}, {pipeline_mode = #tpu.pipeline_mode<synchronous>, transform_indices = @transform_3, window_bounds = array<i64: 1, 128>}, {pipeline_mode = #tpu.pipeline_mode<synchronous>, transform_indices = @transform_4, window_bounds = array<i64: 128, 128>}, {pipeline_mode = #tpu.pipeline_mode<synchronous>, transform_indices = @transform_5, window_bounds = array<i64: 128, 128>}, {pipeline_mode = #tpu.pipeline_mode<synchronous>, transform_indices = @transform_6, window_bounds = array<i64: 1, 128>}, {pipeline_mode = #tpu.pipeline_mode<synchronous>, transform_indices = @transform_7, window_bounds = array<i64: 128, 128>}, {pipeline_mode = #tpu.pipeline_mode<synchronous>, transform_indices = @transform_8, window_bounds = array<i64: 1, 128>}, {pipeline_mode = #tpu.pipeline_mode<synchronous>, transform_indices = @transform_9, window_bounds = array<i64: 32, 128>}]} {
    %c0 = arith.constant 0 : index
    %c0_0 = arith.constant 0 : index
    %0 = vector.load %arg1[%c0, %c0_0] : memref<32x32xbf16, #tpu.memory_space<vmem>>, vector<32x32xbf16>
    %cst = arith.constant 1.000000e+00 : bf16
    %1 = vector.broadcast %cst : bf16 to vector<32x128xbf16>
    %cst_1 = arith.constant dense<0.000000e+00> : vector<32x128xf32>
    %2 = tpu.matmul %0, %1, %cst_1 {dimension_numbers = #tpu.dot_dimension_numbers<[1], [0], [0], [1], [0, 0, 1, 1], [], []>} : vector<32x32xbf16>, vector<32x128xbf16>, vector<32x128xf32> -> vector<32x128xf32>
    %3 = vector.extract_strided_slice %2 {offsets = [0, 0], sizes = [32, 1], strides = [1, 1]} : vector<32x128xf32> to vector<32x1xf32>
    %cst_2 = arith.constant 1.000000e+00 : f32
    %4 = vector.broadcast %cst_2 : f32 to vector<32x1xf32>
    %5 = arith.maximumf %3, %4 : vector<32x1xf32>
    %6 = math.rsqrt %5 : vector<32x1xf32>
    %7 = vector.shape_cast %6 : vector<32x1xf32> to vector<32x1xf32>
    %8 = vector.broadcast %7 : vector<32x1xf32> to vector<32x128xf32>
    %c0_3 = arith.constant 0 : index
    %c0_4 = arith.constant 0 : index
    %9 = vector.load %arg2[%c0_3, %c0_4] : memref<32x128xbf16, #tpu.memory_space<vmem>>, vector<32x128xbf16>
    %10 = arith.extf %9 : vector<32x128xbf16> to vector<32x128xf32>
    %11 = vector.broadcast %6 : vector<32x1xf32> to vector<32x128xf32>
    %12 = arith.mulf %10, %11 : vector<32x128xf32>
    %13 = arith.truncf %12 : vector<32x128xf32> to vector<32x128xbf16>
    %cst_5 = arith.constant 0.000000e+00 : f32
    %14 = vector.broadcast %cst_5 : f32 to vector<32x128xf32>
    %c0_6 = arith.constant 0 : index
    %c0_7 = arith.constant 0 : index
    %15 = vector.load %arg3[%c0_6, %c0_7] : memref<128x128xbf16, #tpu.memory_space<vmem>>, vector<128x128xbf16>
    %cst_8 = arith.constant dense<0.000000e+00> : vector<32x128xf32>
    %16 = tpu.matmul %13, %15, %cst_8 {dimension_numbers = #tpu.dot_dimension_numbers<[1], [0], [0], [1], [0, 0, 1, 1], [], []>} : vector<32x128xbf16>, vector<128x128xbf16>, vector<32x128xf32> -> vector<32x128xf32>
    %17 = arith.truncf %16 : vector<32x128xf32> to vector<32x128xbf16>
    %cst_9 = arith.constant dense<0.000000e+00> : vector<32x128xf32>
    %18 = tpu.matmul %0, %17, %cst_9 {dimension_numbers = #tpu.dot_dimension_numbers<[1], [0], [0], [1], [0, 0, 1, 1], [], []>} : vector<32x32xbf16>, vector<32x128xbf16>, vector<32x128xf32> -> vector<32x128xf32>
    %19 = arith.mulf %18, %8 : vector<32x128xf32>
    %c0_10 = arith.constant 0 : index
    %c0_11 = arith.constant 0 : index
    %20 = vector.load %arg4[%c0_10, %c0_11] : memref<1x128xf32, #tpu.memory_space<vmem>>, vector<1x128xf32>
    %21 = vector.broadcast %20 : vector<1x128xf32> to vector<32x128xf32>
    %22 = arith.addf %19, %21 : vector<32x128xf32>
    %cst_12 = arith.constant 0.000000e+00 : f32
    %23 = vector.broadcast %cst_12 : f32 to vector<32x128xf32>
    %24 = arith.maximumf %22, %23 : vector<32x128xf32>
    %25 = arith.truncf %24 : vector<32x128xf32> to vector<32x128xbf16>
    %c0_13 = arith.constant 0 : index
    %c0_14 = arith.constant 0 : index
    %26 = vector.load %arg5[%c0_13, %c0_14] : memref<128x128xbf16, #tpu.memory_space<vmem>>, vector<128x128xbf16>
    %cst_15 = arith.constant dense<0.000000e+00> : vector<32x128xf32>
    %27 = tpu.matmul %25, %26, %cst_15 {dimension_numbers = #tpu.dot_dimension_numbers<[1], [0], [0], [1], [0, 0, 1, 1], [], []>} : vector<32x128xbf16>, vector<128x128xbf16>, vector<32x128xf32> -> vector<32x128xf32>
    %28 = arith.addf %14, %27 : vector<32x128xf32>
    %29 = arith.mulf %24, %8 : vector<32x128xf32>
    %30 = arith.truncf %29 : vector<32x128xf32> to vector<32x128xbf16>
    %c0_16 = arith.constant 0 : index
    %c0_17 = arith.constant 0 : index
    %31 = vector.load %arg6[%c0_16, %c0_17] : memref<128x128xbf16, #tpu.memory_space<vmem>>, vector<128x128xbf16>
    %cst_18 = arith.constant dense<0.000000e+00> : vector<32x128xf32>
    %32 = tpu.matmul %30, %31, %cst_18 {dimension_numbers = #tpu.dot_dimension_numbers<[1], [0], [0], [1], [0, 0, 1, 1], [], []>} : vector<32x128xbf16>, vector<128x128xbf16>, vector<32x128xf32> -> vector<32x128xf32>
    %33 = arith.truncf %32 : vector<32x128xf32> to vector<32x128xbf16>
    %cst_19 = arith.constant dense<0.000000e+00> : vector<32x128xf32>
    %34 = tpu.matmul %0, %33, %cst_19 {dimension_numbers = #tpu.dot_dimension_numbers<[1], [0], [0], [1], [0, 0, 1, 1], [], []>} : vector<32x32xbf16>, vector<32x128xbf16>, vector<32x128xf32> -> vector<32x128xf32>
    %35 = arith.mulf %34, %8 : vector<32x128xf32>
    %c0_20 = arith.constant 0 : index
    %c0_21 = arith.constant 0 : index
    %36 = vector.load %arg7[%c0_20, %c0_21] : memref<1x128xf32, #tpu.memory_space<vmem>>, vector<1x128xf32>
    %37 = vector.broadcast %36 : vector<1x128xf32> to vector<32x128xf32>
    %38 = arith.addf %35, %37 : vector<32x128xf32>
    %cst_22 = arith.constant 0.000000e+00 : f32
    %39 = vector.broadcast %cst_22 : f32 to vector<32x128xf32>
    %40 = arith.maximumf %38, %39 : vector<32x128xf32>
    %41 = arith.truncf %40 : vector<32x128xf32> to vector<32x128xbf16>
    %c0_23 = arith.constant 0 : index
    %c0_24 = arith.constant 0 : index
    %42 = vector.load %arg8[%c0_23, %c0_24] : memref<128x128xbf16, #tpu.memory_space<vmem>>, vector<128x128xbf16>
    %cst_25 = arith.constant dense<0.000000e+00> : vector<32x128xf32>
    %43 = tpu.matmul %41, %42, %cst_25 {dimension_numbers = #tpu.dot_dimension_numbers<[1], [0], [0], [1], [0, 0, 1, 1], [], []>} : vector<32x128xbf16>, vector<128x128xbf16>, vector<32x128xf32> -> vector<32x128xf32>
    %44 = arith.addf %28, %43 : vector<32x128xf32>
    %45 = arith.truncf %44 : vector<32x128xf32> to vector<32x128xbf16>
    %cst_26 = arith.constant dense<0.000000e+00> : vector<32x128xf32>
    %46 = tpu.matmul %0, %45, %cst_26 {dimension_numbers = #tpu.dot_dimension_numbers<[1], [0], [0], [1], [0, 0, 1, 1], [], []>} : vector<32x32xbf16>, vector<32x128xbf16>, vector<32x128xf32> -> vector<32x128xf32>
    %c0_27 = arith.constant 0 : index
    %c0_28 = arith.constant 0 : index
    %47 = vector.load %arg9[%c0_27, %c0_28] : memref<1x128xf32, #tpu.memory_space<vmem>>, vector<1x128xf32>
    %48 = vector.broadcast %47 : vector<1x128xf32> to vector<32x128xf32>
    %49 = arith.addf %46, %48 : vector<32x128xf32>
    %c0_29 = arith.constant 0 : index
    %c0_30 = arith.constant 0 : index
    %50 = vector.load %arg10[%c0_29, %c0_30] : memref<32x128xf32, #tpu.memory_space<vmem>>, vector<32x128xf32>
    tpu.vector_store %arg10[%c0_29, %c0_30], %49 {strides = array<i32>} : memref<32x128xf32, #tpu.memory_space<vmem>>, vector<32x128xf32>,
    return
  }
  func.func @transform_0(%arg0: i32) -> (i32, i32) {
    %c0_i32 = arith.constant 0 : i32
    %c0_i32_0 = arith.constant 0 : i32
    %c0_i32_1 = arith.constant 0 : i32
    return %c0_i32, %c0_i32_0 : i32, i32
  }
  func.func @transform_1(%arg0: i32) -> (i32, i32) {
    %c0_i32 = arith.constant 0 : i32
    %c0_i32_0 = arith.constant 0 : i32
    %c0_i32_1 = arith.constant 0 : i32
    return %c0_i32, %c0_i32_0 : i32, i32
  }
  func.func @transform_2(%arg0: i32) -> (i32, i32) {
    %c0_i32 = arith.constant 0 : i32
    %c0_i32_0 = arith.constant 0 : i32
    %c0_i32_1 = arith.constant 0 : i32
    return %c0_i32, %c0_i32_0 : i32, i32
  }
  func.func @transform_3(%arg0: i32) -> (i32, i32) {
    %c0_i32 = arith.constant 0 : i32
    %c0_i32_0 = arith.constant 0 : i32
    %c0_i32_1 = arith.constant 0 : i32
    return %c0_i32, %c0_i32_0 : i32, i32
  }
  func.func @transform_4(%arg0: i32) -> (i32, i32) {
    %c0_i32 = arith.constant 0 : i32
    %c0_i32_0 = arith.constant 0 : i32
    %c0_i32_1 = arith.constant 0 : i32
    return %c0_i32, %c0_i32_0 : i32, i32
  }
  func.func @transform_5(%arg0: i32) -> (i32, i32) {
    %c0_i32 = arith.constant 0 : i32
    %c0_i32_0 = arith.constant 0 : i32
    %c0_i32_1 = arith.constant 0 : i32
    return %c0_i32, %c0_i32_0 : i32, i32
  }
  func.func @transform_6(%arg0: i32) -> (i32, i32) {
    %c0_i32 = arith.constant 0 : i32
    %c0_i32_0 = arith.constant 0 : i32
    %c0_i32_1 = arith.constant 0 : i32
    return %c0_i32, %c0_i32_0 : i32, i32
  }
  func.func @transform_7(%arg0: i32) -> (i32, i32) {
    %c0_i32 = arith.constant 0 : i32
    %c0_i32_0 = arith.constant 0 : i32
    %c0_i32_1 = arith.constant 0 : i32
    return %c0_i32, %c0_i32_0 : i32, i32
  }
  func.func @transform_8(%arg0: i32) -> (i32, i32) {
    %c0_i32 = arith.constant 0 : i32
    %c0_i32_0 = arith.constant 0 : i32
    %c0_i32_1 = arith.constant 0 : i32
    return %c0_i32, %c0_i32_0 : i32, i32
  }
  func.func @transform_9(%arg0: i32) -> (i32, i32) {
    %c0_i32 = arith.constant 0 : i32
    %c0_i32_0 = arith.constant 0 : i32
    %c0_i32_1 = arith.constant 0 : i32
    return %c0_i32, %c0_i32_0 : i32, i32
  }
}

</mosaic_0001>

<llo_original>
// kernel: tpu_custom_call.1
$region0: #{tpu_custom_call.1}
  #allocation0 [shape = 'u32[]', space=smem, size = 0x4, offset = 0x4, fixed_abs, tag = 'smem constant byte address 0x4 - core index']
  #allocation1 [shape = 'u32[144,128]{1,0:T(1,128)}', space=vmem, size = 0x12000, scoped, tag = 'internal scratch']
  %s0 = inlined_call_operand.hbm [shape: bf16[32,32], index: 0, kind: input, shape index: {}]
  %s1 = inlined_call_operand.hbm [shape: bf16[32,128], index: 1, kind: input, shape index: {}]
  %s2 = inlined_call_operand.hbm [shape: bf16[128,128], index: 2, kind: input, shape index: {}]
  %s3 = inlined_call_operand.vmem [shape: f32[1,128], index: 3, kind: input, shape index: {}]
  %s4 = inlined_call_operand.hbm [shape: bf16[128,128], index: 4, kind: input, shape index: {}]
  %s5 = inlined_call_operand.hbm [shape: bf16[128,128], index: 5, kind: input, shape index: {}]
  %s6 = inlined_call_operand.vmem [shape: f32[1,128], index: 6, kind: input, shape index: {}]
  %s7 = inlined_call_operand.hbm [shape: bf16[128,128], index: 7, kind: input, shape index: {}]
  %s8 = inlined_call_operand.vmem [shape: f32[1,128], index: 8, kind: input, shape index: {}]
  %s9 = inlined_call_operand.hbm [shape: f32[32,128], index: 9, kind: output, shape index: {}]
  %s10 = sld [smem:[#allocation0]]
  $region70: #{tpu_custom_call.1} parent=0
    _
  %s12 = ssub.s32 1, %s10
  %s13 = scalar_select 0, %s12, %s10
  $region1: #{tpu_custom_call.1} parent=0
    #allocation2 [shape = 'u8[8192]{0}', space=vmem, size = 0x2000, scoped, tag = 'input window, operand 0, single buffered']
    #allocation3 [shape = 's32[1]{0}', space=sflag, size = 0x4, scoped, tag = 'scoped memory for tpu_custom_call.1']
    #allocation4 [shape = 's32[1]{0}', space=sflag, size = 0x4, scoped, tag = 'scoped memory for tpu_custom_call.1']
    #allocation5 [shape = 'u8[8192]{0}', space=vmem, size = 0x2000, scoped, tag = 'input window, operand 1, single buffered']
    #allocation6 [shape = 's32[1]{0}', space=sflag, size = 0x4, scoped, tag = 'scoped memory for tpu_custom_call.1']
    #allocation7 [shape = 'u8[32768]{0}', space=vmem, size = 0x8000, scoped, tag = 'input window, operand 2, single buffered']
    #allocation8 [shape = 'u8[32768]{0}', space=vmem, size = 0x8000, scoped, tag = 'input window, operand 4, single buffered']
    #allocation9 [shape = 's32[1]{0}', space=sflag, size = 0x4, scoped, tag = 'scoped memory for tpu_custom_call.1']
    #allocation10 [shape = 'u8[32768]{0}', space=vmem, size = 0x8000, scoped, tag = 'input window, operand 5, single buffered']
    #allocation11 [shape = 'u8[32768]{0}', space=vmem, size = 0x8000, scoped, tag = 'input window, operand 7, single buffered']
    #allocation12 [shape = 's32[1]{0}', space=sflag, size = 0x4, scoped, tag = 'scoped memory for tpu_custom_call.1']
    #allocation13 [shape = 'u8[16384]{0}', space=vmem, size = 0x4000, scoped, tag = 'output window, operand 0, single buffered']
    %14 = vsyncpa [#allocation3], 0
    %15 = vsyncpa [#allocation6], 0
    %16 = vsyncpa [#allocation9], 0
    %17 = vsyncpa [#allocation12], 0
    %18 = vsyncpa [#allocation4], 0
    // Predicated region
    $region2: #{tpu_custom_call.1} parent=1 // pred_check
      _
    $region3: #{tpu_custom_call.1} parent=1 // pred_check_branch
      %20 = sbr.rel (0) target = $region5
    $region4: #{tpu_custom_call.1} parent=1 // pred_region
      %s22 = ssub.s32 256, 256
      %23 = vsyncadd [#allocation3], %s22
      %s24 = sshll.u32 [#allocation2], 4
      %s25 = int_to_ptr.vmem [resolvable:$true] %s24
      %30 = dma.hbm_to_vmem [thread:$0]  %s0, 256, %s25, [#allocation3], 64, 64, 4
    $region5: #{tpu_custom_call.1} parent=1 // pred_fallthru
      _
    // Predicated region
    $region6: #{tpu_custom_call.1} parent=1 // pred_check
      _
    $region7: #{tpu_custom_call.1} parent=1 // pred_check_branch
      %32 = sbr.rel (0) target = $region9
    $region8: #{tpu_custom_call.1} parent=1 // pred_region
      %s34 = ssub.s32 256, 256
      %35 = vsyncadd [#allocation6], %s34
      %s36 = sshll.u32 [#allocation5], 4
      %s37 = int_to_ptr.vmem [resolvable:$true] %s36
      %42 = dma.hbm_to_vmem [thread:$0]  %s1, 256, %s37, [#allocation6], 64, 64, 4
    $region9: #{tpu_custom_call.1} parent=1 // pred_fallthru
      _
    // Predicated region
    $region10: #{tpu_custom_call.1} parent=1 // pred_check
      _
    $region11: #{tpu_custom_call.1} parent=1 // pred_check_branch
      %44 = sbr.rel (0) target = $region13
    $region12: #{tpu_custom_call.1} parent=1 // pred_region
      %s46 = ssub.s32 1024, 1024
      %47 = vsyncadd [#allocation6], %s46
      %s48 = sshll.u32 [#allocation7], 4
      %s49 = int_to_ptr.vmem [resolvable:$true] %s48
      %54 = dma.hbm_to_vmem [thread:$0]  %s2, 1024, %s49, [#allocation6], 64, 64, 4
    $region13: #{tpu_custom_call.1} parent=1 // pred_fallthru
      _
    // Predicated region
    $region14: #{tpu_custom_call.1} parent=1 // pred_check
      _
    $region15: #{tpu_custom_call.1} parent=1 // pred_check_branch
      %56 = sbr.rel (0) target = $region17
    $region16: #{tpu_custom_call.1} parent=1 // pred_region
      _
    $region17: #{tpu_custom_call.1} parent=1 // pred_fallthru
      _
    // Predicated region
    $region18: #{tpu_custom_call.1} parent=1 // pred_check
      _
    $region19: #{tpu_custom_call.1} parent=1 // pred_check_branch
      %58 = sbr.rel (0) target = $region21
    $region20: #{tpu_custom_call.1} parent=1 // pred_region
      %s60 = ssub.s32 1024, 1024
      %61 = vsyncadd [#allocation9], %s60
      %s62 = sshll.u32 [#allocation8], 4
      %s63 = int_to_ptr.vmem [resolvable:$true] %s62
      %68 = dma.hbm_to_vmem [thread:$0]  %s4, 1024, %s63, [#allocation9], 64, 64, 4
    $region21: #{tpu_custom_call.1} parent=1 // pred_fallthru
      _
    // Predicated region
    $region22: #{tpu_custom_call.1} parent=1 // pred_check
      _
    $region23: #{tpu_custom_call.1} parent=1 // pred_check_branch
      %70 = sbr.rel (0) target = $region25
    $region24: #{tpu_custom_call.1} parent=1 // pred_region
      %s72 = ssub.s32 1024, 1024
      %73 = vsyncadd [#allocation9], %s72
      %s74 = sshll.u32 [#allocation10], 4
      %s75 = int_to_ptr.vmem [resolvable:$true] %s74
      %80 = dma.hbm_to_vmem [thread:$0]  %s5, 1024, %s75, [#allocation9], 64, 64, 4
    $region25: #{tpu_custom_call.1} parent=1 // pred_fallthru
      _
    // Predicated region
    $region26: #{tpu_custom_call.1} parent=1 // pred_check
      _
    $region27: #{tpu_custom_call.1} parent=1 // pred_check_branch
      %82 = sbr.rel (0) target = $region29
    $region28: #{tpu_custom_call.1} parent=1 // pred_region
      _
    $region29: #{tpu_custom_call.1} parent=1 // pred_fallthru
      _
    // Predicated region
    $region30: #{tpu_custom_call.1} parent=1 // pred_check
      _
    $region31: #{tpu_custom_call.1} parent=1 // pred_check_branch
      %84 = sbr.rel (0) target = $region33
    $region32: #{tpu_custom_call.1} parent=1 // pred_region
      %s86 = ssub.s32 1024, 1024
      %87 = vsyncadd [#allocation12], %s86
      %s88 = sshll.u32 [#allocation11], 4
      %s89 = int_to_ptr.vmem [resolvable:$true] %s88
      %94 = dma.hbm_to_vmem [thread:$0]  %s7, 1024, %s89, [#allocation12], 64, 64, 4
    $region33: #{tpu_custom_call.1} parent=1 // pred_fallthru
      _
    // Predicated region
    $region34: #{tpu_custom_call.1} parent=1 // pred_check
      _
    $region35: #{tpu_custom_call.1} parent=1 // pred_check_branch
      %96 = sbr.rel (0) target = $region37
    $region36: #{tpu_custom_call.1} parent=1 // pred_region
      _
    $region37: #{tpu_custom_call.1} parent=1 // pred_fallthru
      _
    // Predicated region
    $region38: #{tpu_custom_call.1} parent=1 // pred_check
      _
    $region39: #{tpu_custom_call.1} parent=1 // pred_check_branch
      %98 = sbr.rel (0) target = $region41
    $region40: #{tpu_custom_call.1} parent=1 // pred_region
      %99 = dma.done [#allocation3], 256
    $region41: #{tpu_custom_call.1} parent=1 // pred_fallthru
      _
    // Predicated region
    $region42: #{tpu_custom_call.1} parent=1 // pred_check
      _
    $region43: #{tpu_custom_call.1} parent=1 // pred_check_branch
      %101 = sbr.rel (0) target = $region45
    $region44: #{tpu_custom_call.1} parent=1 // pred_region
      %102 = dma.done [#allocation6], 256
    $region45: #{tpu_custom_call.1} parent=1 // pred_fallthru
      _
    // Predicated region
    $region46: #{tpu_custom_call.1} parent=1 // pred_check
      _
    $region47: #{tpu_custom_call.1} parent=1 // pred_check_branch
      %104 = sbr.rel (0) target = $region49
    $region48: #{tpu_custom_call.1} parent=1 // pred_region
      %105 = dma.done [#allocation6], 1024
    $region49: #{tpu_custom_call.1} parent=1 // pred_fallthru
      _
    // Predicated region
    $region50: #{tpu_custom_call.1} parent=1 // pred_check
      _
    $region51: #{tpu_custom_call.1} parent=1 // pred_check_branch
      %107 = sbr.rel (0) target = $region53
    $region52: #{tpu_custom_call.1} parent=1 // pred_region
      %108 = dma.done [#allocation9], 1024
    $region53: #{tpu_custom_call.1} parent=1 // pred_fallthru
      _
    // Predicated region
    $region54: #{tpu_custom_call.1} parent=1 // pred_check
      _
    $region55: #{tpu_custom_call.1} parent=1 // pred_check_branch
      %110 = sbr.rel (0) target = $region57
    $region56: #{tpu_custom_call.1} parent=1 // pred_region
      %111 = dma.done [#allocation9], 1024
    $region57: #{tpu_custom_call.1} parent=1 // pred_fallthru
      _
    // Predicated region
    $region58: #{tpu_custom_call.1} parent=1 // pred_check
      _
    $region59: #{tpu_custom_call.1} parent=1 // pred_check_branch
      %113 = sbr.rel (0) target = $region61
    $region60: #{tpu_custom_call.1} parent=1 // pred_region
      %114 = dma.done [#allocation12], 1024
    $region61: #{tpu_custom_call.1} parent=1 // pred_fallthru
      _
    %v117 = vld [vmem:[#allocation2] sm:$0xf]
    %v118 = vld [vmem:[#allocation2 + $0x4] sm:$0xf]
    %v119 = vld [vmem:[#allocation2 + $0x8] sm:$0xf]
    %v120 = vld [vmem:[#allocation2 + $0xc] sm:$0xf]
    %v125 = vunpack.c.l.b16 %v117
    %v126 = vunpack.c.l.b16 %v118
    %v127 = vunpack.c.l.b16 %v119
    %v128 = vunpack.c.l.b16 %v120
    %v129 = vpack.c.b16 %v126, %v125
    %v130 = vpack.c.b16 %v128, %v127
    %vm131 = vcmask 261120
    %v133 = vsel %vm131, %v129, 0
    %v136 = vsel %vm131, %v130, 0
    %138 = vmatprep.subr.bf16.mxu0 0
    %139 = vmatpush1.bf16.msra.mxu0 0
    %140 = vmatprep.subr.bf16.mxu0 0
    %141 = vmatpush1.bf16.msra.mxu0 0
    %142 = vmatprep.subr.bf16.mxu0 0
    %143 = vmatpush1.bf16.msra.mxu0 0
    %144 = vmatprep.subr.bf16.mxu0 0
    %145 = vmatpush1.bf16.msra.mxu0 0
    %146 = vmatprep.subr.bf16.mxu0 0
    %147 = vmatpush1.bf16.msra.mxu0 0
    %148 = vmatprep.subr.bf16.mxu0 0
    %149 = vmatpush1.bf16.msra.mxu0 0
    %150 = vmatprep.subr.bf16.mxu0 0
    %151 = vmatpush1.bf16.msra.mxu0 1065369472
    %152 = vmatprep.subr.bf16.mxu0 0
    %153 = vmatpush1.bf16.msra.mxu0 1065369472
    %154 = vmatprep.subr.bf16.mxu0 0
    %155 = vmatpush2.bf16.msra.mxu0 0
    %156 = vmatprep.subr.bf16.mxu0 0
    %157 = vmatpush2.bf16.msra.mxu0 0
    %158 = vmatprep.subr.bf16.mxu0 0
    %159 = vmatpush2.bf16.msra.mxu0 0
    %160 = vmatprep.subr.bf16.mxu0 0
    %161 = vmatpush2.bf16.msra.mxu0 0
    %162 = vmatprep.subr.bf16.mxu0 0
    %163 = vmatpush2.bf16.msra.mxu0 0
    %164 = vmatprep.subr.bf16.mxu0 0
    %165 = vmatpush2.bf16.msra.mxu0 0
    %166 = vmatprep.subr.bf16.mxu0 0
    %167 = vmatpush2.bf16.msra.mxu0 0
    %168 = vmatprep.subr.bf16.mxu0 0
    %169 = vmatpush2.bf16.msra.mxu0 0
    %170 = vmatprep.mubr.bf16.mxu0 0
    %171 = vmatmul.mubr.bf16.gmra.mxu0 %v133
    %v172 = vpop.f32.mrf.mxu0
    %v173 = vadd.f32 0.0, %v172
    %v174 = vpop.f32.mrf.mxu0
    %v175 = vpop.f32.mrf.mxu0
    %v176 = vadd.f32 0.0, %v175
    %v177 = vpop.f32.mrf.mxu0
    %178 = vmatprep.mubr.bf16.mxu0 0
    %179 = vmatmul.mubr.bf16.gmra.mxu0 %v136
    %v180 = vpop.f32.mrf.mxu0
    %v181 = vadd.f32 0.0, %v180
    %v182 = vpop.f32.mrf.mxu0
    %v183 = vpop.f32.mrf.mxu0
    %v184 = vadd.f32 0.0, %v183
    %v185 = vpop.f32.mrf.mxu0
    %186 = vdwg.mxu0
    %v187 = vmax.f32 %v173, 1.0
    %v188 = vmax.f32 %v176, 1.0
    %v189 = vmax.f32 %v181, 1.0
    %v190 = vmax.f32 %v184, 1.0
    %v191 = vrsqrt.pop %v187
    %v192 = vrsqrt.pop %v188
    %v193 = vrsqrt.pop %v189
    %v194 = vrsqrt.pop %v190
    %196 = vset.pattern.permute.xlu0 0
    %197 = vperm.xlu0 %196, %v191
    %v198 = vpop.permute.xlu0 %197
    %201 = vset.pattern.permute.xlu0 0
    %202 = vperm.xlu0 %201, %v192
    %v203 = vpop.permute.xlu0 %202
    %206 = vset.pattern.permute.xlu0 0
    %207 = vperm.xlu0 %206, %v193
    %v208 = vpop.permute.xlu0 %207
    %211 = vset.pattern.permute.xlu0 0
    %212 = vperm.xlu0 %211, %v194
    %v213 = vpop.permute.xlu0 %212
    %v215 = vld [vmem:[#allocation5] sm:$0xf]
    %v216 = vld [vmem:[#allocation5 + $0x4] sm:$0xf]
    %v217 = vld [vmem:[#allocation5 + $0x8] sm:$0xf]
    %v218 = vld [vmem:[#allocation5 + $0xc] sm:$0xf]
    %v219 = vunpack.c.l.bf16 %v215
    %v220 = vunpack.c.l.bf16 %v216
    %v221 = vunpack.c.l.bf16 %v217
    %v222 = vunpack.c.l.bf16 %v218
    %v223 = vmul.f32 %v219, %v198
    %v224 = vmul.f32 %v220, %v203
    %v225 = vmul.f32 %v221, %v208
    %v226 = vmul.f32 %v222, %v213
    %v227 = vpack.c.bf16 %v224, %v223
    %v228 = vpack.c.bf16 %v226, %v225
    %v229 = vld [vmem:[#allocation7] sm:$0xf]
    %v230 = vld [vmem:[#allocation7 + $0x4] sm:$0xf]
    %v231 = vld [vmem:[#allocation7 + $0x8] sm:$0xf]
    %v232 = vld [vmem:[#allocation7 + $0xc] sm:$0xf]
    %v233 = vld [vmem:[#allocation7 + $0x10] sm:$0xf]
    %v234 = vld [vmem:[#allocation7 + $0x14] sm:$0xf]
    %v235 = vld [vmem:[#allocation7 + $0x18] sm:$0xf]
    %v236 = vld [vmem:[#allocation7 + $0x1c] sm:$0xf]
    %v237 = vld [vmem:[#allocation7 + $0x20] sm:$0xf]
    %v238 = vld [vmem:[#allocation7 + $0x24] sm:$0xf]
    %v239 = vld [vmem:[#allocation7 + $0x28] sm:$0xf]
    %v240 = vld [vmem:[#allocation7 + $0x2c] sm:$0xf]
    %v241 = vld [vmem:[#allocation7 + $0x30] sm:$0xf]
    %v242 = vld [vmem:[#allocation7 + $0x34] sm:$0xf]
    %v243 = vld [vmem:[#allocation7 + $0x38] sm:$0xf]
    %v244 = vld [vmem:[#allocation7 + $0x3c] sm:$0xf]
    %v261 = vunpack.c.l.b16 %v229
    %v262 = vunpack.c.l.b16 %v230
    %v263 = vunpack.c.l.b16 %v231
    %v264 = vunpack.c.l.b16 %v232
    %v265 = vunpack.c.l.b16 %v233
    %v266 = vunpack.c.l.b16 %v234
    %v267 = vunpack.c.l.b16 %v235
    %v268 = vunpack.c.l.b16 %v236
    %v269 = vunpack.c.l.b16 %v237
    %v270 = vunpack.c.l.b16 %v238
    %v271 = vunpack.c.l.b16 %v239
    %v272 = vunpack.c.l.b16 %v240
    %v273 = vunpack.c.l.b16 %v241
    %v274 = vunpack.c.l.b16 %v242
    %v275 = vunpack.c.l.b16 %v243
    %v276 = vunpack.c.l.b16 %v244
    %v277 = vpack.c.b16 %v262, %v261
    %v278 = vpack.c.b16 %v264, %v263
    %v279 = vpack.c.b16 %v266, %v265
    %v280 = vpack.c.b16 %v268, %v267
    %v281 = vpack.c.b16 %v270, %v269
    %v282 = vpack.c.b16 %v272, %v271
    %v283 = vpack.c.b16 %v274, %v273
    %v284 = vpack.c.b16 %v276, %v275
    %293 = vmatprep.subr.bf16.mxu0 0
    %294 = vmatpush1.bf16.msra.mxu0 %v284
    %295 = vmatprep.subr.bf16.mxu0 0
    %296 = vmatpush1.bf16.msra.mxu0 %v283
    %297 = vmatprep.subr.bf16.mxu0 0
    %298 = vmatpush1.bf16.msra.mxu0 %v282
    %299 = vmatprep.subr.bf16.mxu0 0
    %300 = vmatpush1.bf16.msra.mxu0 %v281
    %301 = vmatprep.subr.bf16.mxu0 0
    %302 = vmatpush1.bf16.msra.mxu0 %v280
    %303 = vmatprep.subr.bf16.mxu0 0
    %304 = vmatpush1.bf16.msra.mxu0 %v279
    %305 = vmatprep.subr.bf16.mxu0 0
    %306 = vmatpush1.bf16.msra.mxu0 %v278
    %307 = vmatprep.subr.bf16.mxu0 0
    %308 = vmatpush1.bf16.msra.mxu0 %v277
    %309 = vmatprep.subr.bf16.mxu0 0
    %310 = vmatpush2.bf16.msra.mxu0 0
    %311 = vmatprep.subr.bf16.mxu0 0
    %312 = vmatpush2.bf16.msra.mxu0 0
    %313 = vmatprep.subr.bf16.mxu0 0
    %314 = vmatpush2.bf16.msra.mxu0 0
    %315 = vmatprep.subr.bf16.mxu0 0
    %316 = vmatpush2.bf16.msra.mxu0 0
    %317 = vmatprep.subr.bf16.mxu0 0
    %318 = vmatpush2.bf16.msra.mxu0 0
    %319 = vmatprep.subr.bf16.mxu0 0
    %320 = vmatpush2.bf16.msra.mxu0 0
    %321 = vmatprep.subr.bf16.mxu0 0
    %322 = vmatpush2.bf16.msra.mxu0 0
    %323 = vmatprep.subr.bf16.mxu0 0
    %324 = vmatpush2.bf16.msra.mxu0 0
    %325 = vmatprep.mubr.bf16.mxu0 0
    %326 = vmatmul.mubr.bf16.gmra.mxu0 %v227
    %v327 = vpop.f32.mrf.mxu0
    %v328 = vadd.f32 0.0, %v327
    %v329 = vpop.f32.mrf.mxu0
    %v330 = vpop.f32.mrf.mxu0
    %v331 = vadd.f32 0.0, %v330
    %v332 = vpop.f32.mrf.mxu0
    %333 = vmatprep.mubr.bf16.mxu0 0
    %334 = vmatmul.mubr.bf16.gmra.mxu0 %v228
    %v335 = vpop.f32.mrf.mxu0
    %v336 = vadd.f32 0.0, %v335
    %v337 = vpop.f32.mrf.mxu0
    %v338 = vpop.f32.mrf.mxu0
    %v339 = vadd.f32 0.0, %v338
    %v340 = vpop.f32.mrf.mxu0
    %341 = vdwg.mxu0
    %v342 = vpack.c.bf16 %v331, %v328
    %v343 = vpack.c.bf16 %v339, %v336
    %344 = vmatprep.subr.bf16.mxu0 0
    %345 = vmatpush1.bf16.msra.mxu0 0
    %346 = vmatprep.subr.bf16.mxu0 0
    %347 = vmatpush1.bf16.msra.mxu0 0
    %348 = vmatprep.subr.bf16.mxu0 0
    %349 = vmatpush1.bf16.msra.mxu0 0
    %350 = vmatprep.subr.bf16.mxu0 0
    %351 = vmatpush1.bf16.msra.mxu0 0
    %352 = vmatprep.subr.bf16.mxu0 0
    %353 = vmatpush1.bf16.msra.mxu0 0
    %354 = vmatprep.subr.bf16.mxu0 0
    %355 = vmatpush1.bf16.msra.mxu0 0
    %356 = vmatprep.subr.bf16.mxu0 0
    %357 = vmatpush1.bf16.msra.mxu0 %v343
    %358 = vmatprep.subr.bf16.mxu0 0
    %359 = vmatpush1.bf16.msra.mxu0 %v342
    %360 = vmatprep.subr.bf16.mxu0 0
    %361 = vmatpush2.bf16.msra.mxu0 0
    %362 = vmatprep.subr.bf16.mxu0 0
    %363 = vmatpush2.bf16.msra.mxu0 0
    %364 = vmatprep.subr.bf16.mxu0 0
    %365 = vmatpush2.bf16.msra.mxu0 0
    %366 = vmatprep.subr.bf16.mxu0 0
    %367 = vmatpush2.bf16.msra.mxu0 0
    %368 = vmatprep.subr.bf16.mxu0 0
    %369 = vmatpush2.bf16.msra.mxu0 0
    %370 = vmatprep.subr.bf16.mxu0 0
    %371 = vmatpush2.bf16.msra.mxu0 0
    %372 = vmatprep.subr.bf16.mxu0 0
    %373 = vmatpush2.bf16.msra.mxu0 0
    %374 = vmatprep.subr.bf16.mxu0 0
    %375 = vmatpush2.bf16.msra.mxu0 0
    %376 = vmatprep.mubr.bf16.mxu0 0
    %377 = vmatmul.mubr.bf16.gmra.mxu0 %v133
    %v378 = vpop.f32.mrf.mxu0
    %v379 = vadd.f32 0.0, %v378
    %v380 = vpop.f32.mrf.mxu0
    %v381 = vpop.f32.mrf.mxu0
    %v382 = vadd.f32 0.0, %v381
    %v383 = vpop.f32.mrf.mxu0
    %384 = vmatprep.mubr.bf16.mxu0 0
    %385 = vmatmul.mubr.bf16.gmra.mxu0 %v136
    %v386 = vpop.f32.mrf.mxu0
    %v387 = vadd.f32 0.0, %v386
    %v388 = vpop.f32.mrf.mxu0
    %v389 = vpop.f32.mrf.mxu0
    %v390 = vadd.f32 0.0, %v389
    %v391 = vpop.f32.mrf.mxu0
    %392 = vdwg.mxu0
    %v393 = vmul.f32 %v379, %v198
    %v394 = vmul.f32 %v382, %v203
    %v395 = vmul.f32 %v387, %v208
    %v396 = vmul.f32 %v390, %v213
    %v397 = vld [vmem:[%s3] sm:$0x1]
    %v399 = vlaneseq
    %v400 = vshrl.u32 %v399, 7
    %v401 = vsub.s32 0, %v400
    %v402 = vrot.slane %v397, %v401
    %v404 = vadd.f32 %v393, %v402
    %v405 = vadd.f32 %v394, %v402
    %v406 = vadd.f32 %v395, %v402
    %v407 = vadd.f32 %v396, %v402
    %v408 = vmax.f32 %v404, 0.0
    %v409 = vmax.f32 %v405, 0.0
    %v410 = vmax.f32 %v406, 0.0
    %v411 = vmax.f32 %v407, 0.0
    %v412 = vpack.c.bf16 %v409, %v408
    %v413 = vpack.c.bf16 %v411, %v410
    %v414 = vld [vmem:[#allocation8] sm:$0xf]
    %v415 = vld [vmem:[#allocation8 + $0x4] sm:$0xf]
    %v416 = vld [vmem:[#allocation8 + $0x8] sm:$0xf]
    %v417 = vld [vmem:[#allocation8 + $0xc] sm:$0xf]
    %v418 = vld [vmem:[#allocation8 + $0x10] sm:$0xf]
    %v419 = vld [vmem:[#allocation8 + $0x14] sm:$0xf]
    %v420 = vld [vmem:[#allocation8 + $0x18] sm:$0xf]
    %v421 = vld [vmem:[#allocation8 + $0x1c] sm:$0xf]
    %v422 = vld [vmem:[#allocation8 + $0x20] sm:$0xf]
    %v423 = vld [vmem:[#allocation8 + $0x24] sm:$0xf]
    %v424 = vld [vmem:[#allocation8 + $0x28] sm:$0xf]
    %v425 = vld [vmem:[#allocation8 + $0x2c] sm:$0xf]
    %v426 = vld [vmem:[#allocation8 + $0x30] sm:$0xf]
    %v427 = vld [vmem:[#allocation8 + $0x34] sm:$0xf]
    %v428 = vld [vmem:[#allocation8 + $0x38] sm:$0xf]
    %v429 = vld [vmem:[#allocation8 + $0x3c] sm:$0xf]
    %v430 = vmul.f32 %v408, %v198
    %v431 = vmul.f32 %v409, %v203
    %v432 = vmul.f32 %v410, %v208
    %v433 = vmul.f32 %v411, %v213
    %v434 = vpack.c.bf16 %v431, %v430
    %v435 = vpack.c.bf16 %v433, %v432
    %v436 = vld [vmem:[#allocation10] sm:$0xf]
    %v437 = vld [vmem:[#allocation10 + $0x4] sm:$0xf]
    %v438 = vld [vmem:[#allocation10 + $0x8] sm:$0xf]
    %v439 = vld [vmem:[#allocation10 + $0xc] sm:$0xf]
    %v440 = vld [vmem:[#allocation10 + $0x10] sm:$0xf]
    %v441 = vld [vmem:[#allocation10 + $0x14] sm:$0xf]
    %v442 = vld [vmem:[#allocation10 + $0x18] sm:$0xf]
    %v443 = vld [vmem:[#allocation10 + $0x1c] sm:$0xf]
    %v444 = vld [vmem:[#allocation10 + $0x20] sm:$0xf]
    %v445 = vld [vmem:[#allocation10 + $0x24] sm:$0xf]
    %v446 = vld [vmem:[#allocation10 + $0x28] sm:$0xf]
    %v447 = vld [vmem:[#allocation10 + $0x2c] sm:$0xf]
    %v448 = vld [vmem:[#allocation10 + $0x30] sm:$0xf]
    %v449 = vld [vmem:[#allocation10 + $0x34] sm:$0xf]
    %v450 = vld [vmem:[#allocation10 + $0x38] sm:$0xf]
    %v451 = vld [vmem:[#allocation10 + $0x3c] sm:$0xf]
    %v468 = vunpack.c.l.b16 %v436
    %v469 = vunpack.c.l.b16 %v437
    %v470 = vunpack.c.l.b16 %v438
    %v471 = vunpack.c.l.b16 %v439
    %v472 = vunpack.c.l.b16 %v440
    %v473 = vunpack.c.l.b16 %v441
    %v474 = vunpack.c.l.b16 %v442
    %v475 = vunpack.c.l.b16 %v443
    %v476 = vunpack.c.l.b16 %v444
    %v477 = vunpack.c.l.b16 %v445
    %v478 = vunpack.c.l.b16 %v446
    %v479 = vunpack.c.l.b16 %v447
    %v480 = vunpack.c.l.b16 %v448
    %v481 = vunpack.c.l.b16 %v449
    %v482 = vunpack.c.l.b16 %v450
    %v483 = vunpack.c.l.b16 %v451
    %v484 = vpack.c.b16 %v469, %v468
    %v485 = vpack.c.b16 %v471, %v470
    %v486 = vpack.c.b16 %v473, %v472
    %v487 = vpack.c.b16 %v475, %v474
    %v488 = vpack.c.b16 %v477, %v476
    %v489 = vpack.c.b16 %v479, %v478
    %v490 = vpack.c.b16 %v481, %v480
    %v491 = vpack.c.b16 %v483, %v482
    %500 = vmatprep.subr.bf16.mxu0 0
    %501 = vmatpush1.bf16.msra.mxu0 %v491
    %502 = vmatprep.subr.bf16.mxu0 0
    %503 = vmatpush1.bf16.msra.mxu0 %v490
    %504 = vmatprep.subr.bf16.mxu0 0
    %505 = vmatpush1.bf16.msra.mxu0 %v489
    %506 = vmatprep.subr.bf16.mxu0 0
    %507 = vmatpush1.bf16.msra.mxu0 %v488
    %508 = vmatprep.subr.bf16.mxu0 0
    %509 = vmatpush1.bf16.msra.mxu0 %v487
    %510 = vmatprep.subr.bf16.mxu0 0
    %511 = vmatpush1.bf16.msra.mxu0 %v486
    %512 = vmatprep.subr.bf16.mxu0 0
    %513 = vmatpush1.bf16.msra.mxu0 %v485
    %514 = vmatprep.subr.bf16.mxu0 0
    %515 = vmatpush1.bf16.msra.mxu0 %v484
    %516 = vmatprep.subr.bf16.mxu0 0
    %517 = vmatpush2.bf16.msra.mxu0 0
    %518 = vmatprep.subr.bf16.mxu0 0
    %519 = vmatpush2.bf16.msra.mxu0 0
    %520 = vmatprep.subr.bf16.mxu0 0
    %521 = vmatpush2.bf16.msra.mxu0 0
    %522 = vmatprep.subr.bf16.mxu0 0
    %523 = vmatpush2.bf16.msra.mxu0 0
    %524 = vmatprep.subr.bf16.mxu0 0
    %525 = vmatpush2.bf16.msra.mxu0 0
    %526 = vmatprep.subr.bf16.mxu0 0
    %527 = vmatpush2.bf16.msra.mxu0 0
    %528 = vmatprep.subr.bf16.mxu0 0
    %529 = vmatpush2.bf16.msra.mxu0 0
    %530 = vmatprep.subr.bf16.mxu0 0
    %531 = vmatpush2.bf16.msra.mxu0 0
    %532 = vmatprep.mubr.bf16.mxu0 0
    %533 = vmatmul.mubr.bf16.gmra.mxu0 %v434
    %v534 = vpop.f32.mrf.mxu0
    %v535 = vadd.f32 0.0, %v534
    %v536 = vpop.f32.mrf.mxu0
    %v537 = vpop.f32.mrf.mxu0
    %v538 = vadd.f32 0.0, %v537
    %v539 = vpop.f32.mrf.mxu0
    %540 = vmatprep.mubr.bf16.mxu0 0
    %541 = vmatmul.mubr.bf16.gmra.mxu0 %v435
    %v542 = vpop.f32.mrf.mxu0
    %v543 = vadd.f32 0.0, %v542
    %v544 = vpop.f32.mrf.mxu0
    %v545 = vpop.f32.mrf.mxu0
    %v546 = vadd.f32 0.0, %v545
    %v547 = vpop.f32.mrf.mxu0
    %548 = vdwg.mxu0
    %v549 = vpack.c.bf16 %v538, %v535
    %v550 = vpack.c.bf16 %v546, %v543
    %551 = vmatprep.subr.bf16.mxu0 0
    %552 = vmatpush1.bf16.msra.mxu0 0
    %553 = vmatprep.subr.bf16.mxu0 0
    %554 = vmatpush1.bf16.msra.mxu0 0
    %555 = vmatprep.subr.bf16.mxu0 0
    %556 = vmatpush1.bf16.msra.mxu0 0
    %557 = vmatprep.subr.bf16.mxu0 0
    %558 = vmatpush1.bf16.msra.mxu0 0
    %559 = vmatprep.subr.bf16.mxu0 0
    %560 = vmatpush1.bf16.msra.mxu0 0
    %561 = vmatprep.subr.bf16.mxu0 0
    %562 = vmatpush1.bf16.msra.mxu0 0
    %563 = vmatprep.subr.bf16.mxu0 0
    %564 = vmatpush1.bf16.msra.mxu0 %v550
    %565 = vmatprep.subr.bf16.mxu0 0
    %566 = vmatpush1.bf16.msra.mxu0 %v549
    %567 = vmatprep.subr.bf16.mxu0 0
    %568 = vmatpush2.bf16.msra.mxu0 0
    %569 = vmatprep.subr.bf16.mxu0 0
    %570 = vmatpush2.bf16.msra.mxu0 0
    %571 = vmatprep.subr.bf16.mxu0 0
    %572 = vmatpush2.bf16.msra.mxu0 0
    %573 = vmatprep.subr.bf16.mxu0 0
    %574 = vmatpush2.bf16.msra.mxu0 0
    %575 = vmatprep.subr.bf16.mxu0 0
    %576 = vmatpush2.bf16.msra.mxu0 0
    %577 = vmatprep.subr.bf16.mxu0 0
    %578 = vmatpush2.bf16.msra.mxu0 0
    %579 = vmatprep.subr.bf16.mxu0 0
    %580 = vmatpush2.bf16.msra.mxu0 0
    %581 = vmatprep.subr.bf16.mxu0 0
    %582 = vmatpush2.bf16.msra.mxu0 0
    %583 = vmatprep.mubr.bf16.mxu0 0
    %584 = vmatmul.mubr.bf16.gmra.mxu0 %v133
    %v585 = vpop.f32.mrf.mxu0
    %v586 = vadd.f32 0.0, %v585
    %v587 = vpop.f32.mrf.mxu0
    %v588 = vpop.f32.mrf.mxu0
    %v589 = vadd.f32 0.0, %v588
    %v590 = vpop.f32.mrf.mxu0
    %591 = vmatprep.mubr.bf16.mxu0 0
    %592 = vmatmul.mubr.bf16.gmra.mxu0 %v136
    %v593 = vpop.f32.mrf.mxu0
    %v594 = vadd.f32 0.0, %v593
    %v595 = vpop.f32.mrf.mxu0
    %v596 = vpop.f32.mrf.mxu0
    %v597 = vadd.f32 0.0, %v596
    %v598 = vpop.f32.mrf.mxu0
    %599 = vdwg.mxu0
    %v600 = vmul.f32 %v586, %v198
    %v601 = vmul.f32 %v589, %v203
    %v602 = vmul.f32 %v594, %v208
    %v603 = vmul.f32 %v597, %v213
    %v604 = vld [vmem:[%s6] sm:$0x1]
    %v606 = vlaneseq
    %v607 = vshrl.u32 %v606, 7
    %v608 = vsub.s32 0, %v607
    %v609 = vrot.slane %v604, %v608
    %v611 = vadd.f32 %v600, %v609
    %v612 = vadd.f32 %v601, %v609
    %v613 = vadd.f32 %v602, %v609
    %v614 = vadd.f32 %v603, %v609
    %v615 = vmax.f32 %v611, 0.0
    %v616 = vmax.f32 %v612, 0.0
    %v617 = vmax.f32 %v613, 0.0
    %v618 = vmax.f32 %v614, 0.0
    %v619 = vpack.c.bf16 %v616, %v615
    %v620 = vpack.c.bf16 %v618, %v617
    %v621 = vld [vmem:[#allocation11] sm:$0xf]
    %v622 = vld [vmem:[#allocation11 + $0x4] sm:$0xf]
    %v623 = vld [vmem:[#allocation11 + $0x8] sm:$0xf]
    %v624 = vld [vmem:[#allocation11 + $0xc] sm:$0xf]
    %v625 = vld [vmem:[#allocation11 + $0x10] sm:$0xf]
    %v626 = vld [vmem:[#allocation11 + $0x14] sm:$0xf]
    %v627 = vld [vmem:[#allocation11 + $0x18] sm:$0xf]
    %v628 = vld [vmem:[#allocation11 + $0x1c] sm:$0xf]
    %v629 = vld [vmem:[#allocation11 + $0x20] sm:$0xf]
    %v630 = vld [vmem:[#allocation11 + $0x24] sm:$0xf]
    %v631 = vld [vmem:[#allocation11 + $0x28] sm:$0xf]
    %v632 = vld [vmem:[#allocation11 + $0x2c] sm:$0xf]
    %v633 = vld [vmem:[#allocation11 + $0x30] sm:$0xf]
    %v634 = vld [vmem:[#allocation11 + $0x34] sm:$0xf]
    %v635 = vld [vmem:[#allocation11 + $0x38] sm:$0xf]
    %v636 = vld [vmem:[#allocation11 + $0x3c] sm:$0xf]
    %v653 = vunpack.c.l.b16 %v621
    %v654 = vunpack.c.l.b16 %v622
    %v655 = vunpack.c.l.b16 %v623
    %v656 = vunpack.c.l.b16 %v624
    %v657 = vunpack.c.l.b16 %v625
    %v658 = vunpack.c.l.b16 %v626
    %v659 = vunpack.c.l.b16 %v627
    %v660 = vunpack.c.l.b16 %v628
    %v661 = vunpack.c.l.b16 %v629
    %v662 = vunpack.c.l.b16 %v630
    %v663 = vunpack.c.l.b16 %v631
    %v664 = vunpack.c.l.b16 %v632
    %v665 = vunpack.c.l.b16 %v633
    %v666 = vunpack.c.l.b16 %v634
    %v667 = vunpack.c.l.b16 %v635
    %v668 = vunpack.c.l.b16 %v636
    %v669 = vpack.c.b16 %v654, %v653
    %v670 = vpack.c.b16 %v656, %v655
    %v671 = vpack.c.b16 %v658, %v657
    %v672 = vpack.c.b16 %v660, %v659
    %v673 = vpack.c.b16 %v662, %v661
    %v674 = vpack.c.b16 %v664, %v663
    %v675 = vpack.c.b16 %v666, %v665
    %v676 = vpack.c.b16 %v668, %v667
    %685 = vmatprep.subr.bf16.mxu0 0
    %686 = vmatpush1.bf16.msra.mxu0 %v676
    %687 = vmatprep.subr.bf16.mxu0 0
    %688 = vmatpush1.bf16.msra.mxu0 %v675
    %689 = vmatprep.subr.bf16.mxu0 0
    %690 = vmatpush1.bf16.msra.mxu0 %v674
    %691 = vmatprep.subr.bf16.mxu0 0
    %692 = vmatpush1.bf16.msra.mxu0 %v673
    %693 = vmatprep.subr.bf16.mxu0 0
    %694 = vmatpush1.bf16.msra.mxu0 %v672
    %695 = vmatprep.subr.bf16.mxu0 0
    %696 = vmatpush1.bf16.msra.mxu0 %v671
    %697 = vmatprep.subr.bf16.mxu0 0
    %698 = vmatpush1.bf16.msra.mxu0 %v670
    %699 = vmatprep.subr.bf16.mxu0 0
    %700 = vmatpush1.bf16.msra.mxu0 %v669
    %701 = vmatprep.subr.bf16.mxu0 0
    %702 = vmatpush2.bf16.msra.mxu0 0
    %703 = vmatprep.subr.bf16.mxu0 0
    %704 = vmatpush2.bf16.msra.mxu0 0
    %705 = vmatprep.subr.bf16.mxu0 0
    %706 = vmatpush2.bf16.msra.mxu0 0
    %707 = vmatprep.subr.bf16.mxu0 0
    %708 = vmatpush2.bf16.msra.mxu0 0
    %709 = vmatprep.subr.bf16.mxu0 0
    %710 = vmatpush2.bf16.msra.mxu0 0
    %711 = vmatprep.subr.bf16.mxu0 0
    %712 = vmatpush2.bf16.msra.mxu0 0
    %713 = vmatprep.subr.bf16.mxu0 0
    %714 = vmatpush2.bf16.msra.mxu0 0
    %715 = vmatprep.subr.bf16.mxu0 0
    %716 = vmatpush2.bf16.msra.mxu0 0
    %717 = vmatprep.mubr.bf16.mxu0 0
    %718 = vmatmul.mubr.bf16.gmra.mxu0 %v619
    %v719 = vpop.f32.mrf.mxu0
    %v720 = vadd.f32 0.0, %v719
    %v721 = vpop.f32.mrf.mxu0
    %v722 = vpop.f32.mrf.mxu0
    %v723 = vadd.f32 0.0, %v722
    %v724 = vpop.f32.mrf.mxu0
    %725 = vmatprep.mubr.bf16.mxu0 0
    %726 = vmatmul.mubr.bf16.gmra.mxu0 %v620
    %v727 = vpop.f32.mrf.mxu0
    %v728 = vadd.f32 0.0, %v727
    %v729 = vpop.f32.mrf.mxu0
    %v730 = vpop.f32.mrf.mxu0
    %v731 = vadd.f32 0.0, %v730
    %v732 = vpop.f32.mrf.mxu0
    %733 = vdwg.mxu0
    %v750 = vunpack.c.l.b16 %v414
    %v751 = vunpack.c.l.b16 %v415
    %v752 = vunpack.c.l.b16 %v416
    %v753 = vunpack.c.l.b16 %v417
    %v754 = vunpack.c.l.b16 %v418
    %v755 = vunpack.c.l.b16 %v419
    %v756 = vunpack.c.l.b16 %v420
    %v757 = vunpack.c.l.b16 %v421
    %v758 = vunpack.c.l.b16 %v422
    %v759 = vunpack.c.l.b16 %v423
    %v760 = vunpack.c.l.b16 %v424
    %v761 = vunpack.c.l.b16 %v425
    %v762 = vunpack.c.l.b16 %v426
    %v763 = vunpack.c.l.b16 %v427
    %v764 = vunpack.c.l.b16 %v428
    %v765 = vunpack.c.l.b16 %v429
    %v766 = vpack.c.b16 %v751, %v750
    %v767 = vpack.c.b16 %v753, %v752
    %v768 = vpack.c.b16 %v755, %v754
    %v769 = vpack.c.b16 %v757, %v756
    %v770 = vpack.c.b16 %v759, %v758
    %v771 = vpack.c.b16 %v761, %v760
    %v772 = vpack.c.b16 %v763, %v762
    %v773 = vpack.c.b16 %v765, %v764
    %782 = vmatprep.subr.bf16.mxu0 0
    %783 = vmatpush1.bf16.msra.mxu0 %v773
    %784 = vmatprep.subr.bf16.mxu0 0
    %785 = vmatpush1.bf16.msra.mxu0 %v772
    %786 = vmatprep.subr.bf16.mxu0 0
    %787 = vmatpush1.bf16.msra.mxu0 %v771
    %788 = vmatprep.subr.bf16.mxu0 0
    %789 = vmatpush1.bf16.msra.mxu0 %v770
    %790 = vmatprep.subr.bf16.mxu0 0
    %791 = vmatpush1.bf16.msra.mxu0 %v769
    %792 = vmatprep.subr.bf16.mxu0 0
    %793 = vmatpush1.bf16.msra.mxu0 %v768
    %794 = vmatprep.subr.bf16.mxu0 0
    %795 = vmatpush1.bf16.msra.mxu0 %v767
    %796 = vmatprep.subr.bf16.mxu0 0
    %797 = vmatpush1.bf16.msra.mxu0 %v766
    %798 = vmatprep.subr.bf16.mxu0 0
    %799 = vmatpush2.bf16.msra.mxu0 0
    %800 = vmatprep.subr.bf16.mxu0 0
    %801 = vmatpush2.bf16.msra.mxu0 0
    %802 = vmatprep.subr.bf16.mxu0 0
    %803 = vmatpush2.bf16.msra.mxu0 0
    %804 = vmatprep.subr.bf16.mxu0 0
    %805 = vmatpush2.bf16.msra.mxu0 0
    %806 = vmatprep.subr.bf16.mxu0 0
    %807 = vmatpush2.bf16.msra.mxu0 0
    %808 = vmatprep.subr.bf16.mxu0 0
    %809 = vmatpush2.bf16.msra.mxu0 0
    %810 = vmatprep.subr.bf16.mxu0 0
    %811 = vmatpush2.bf16.msra.mxu0 0
    %812 = vmatprep.subr.bf16.mxu0 0
    %813 = vmatpush2.bf16.msra.mxu0 0
    %814 = vmatprep.mubr.bf16.mxu0 0
    %815 = vmatmul.mubr.bf16.gmra.mxu0 %v412
    %v816 = vpop.f32.mrf.mxu0
    %v817 = vadd.f32 %v720, %v816
    %v818 = vpop.f32.mrf.mxu0
    %v819 = vpop.f32.mrf.mxu0
    %v820 = vadd.f32 %v723, %v819
    %v821 = vpop.f32.mrf.mxu0
    %822 = vmatprep.mubr.bf16.mxu0 0
    %823 = vmatmul.mubr.bf16.gmra.mxu0 %v413
    %v824 = vpop.f32.mrf.mxu0
    %v825 = vadd.f32 %v728, %v824
    %v826 = vpop.f32.mrf.mxu0
    %v827 = vpop.f32.mrf.mxu0
    %v828 = vadd.f32 %v731, %v827
    %v829 = vpop.f32.mrf.mxu0
    %830 = vdwg.mxu0
    %v831 = vpack.c.bf16 %v820, %v817
    %v832 = vpack.c.bf16 %v828, %v825
    %v833 = vld [vmem:[%s8] sm:$0x1]
    %v835 = vlaneseq
    %v836 = vshrl.u32 %v835, 7
    %v837 = vsub.s32 0, %v836
    %v838 = vrot.slane %v833, %v837
    %840 = vmatprep.subr.bf16.mxu0 0
    %841 = vmatpush1.bf16.msra.mxu0 0
    %842 = vmatprep.subr.bf16.mxu0 0
    %843 = vmatpush1.bf16.msra.mxu0 0
    %844 = vmatprep.subr.bf16.mxu0 0
    %845 = vmatpush1.bf16.msra.mxu0 0
    %846 = vmatprep.subr.bf16.mxu0 0
    %847 = vmatpush1.bf16.msra.mxu0 0
    %848 = vmatprep.subr.bf16.mxu0 0
    %849 = vmatpush1.bf16.msra.mxu0 0
    %850 = vmatprep.subr.bf16.mxu0 0
    %851 = vmatpush1.bf16.msra.mxu0 0
    %852 = vmatprep.subr.bf16.mxu0 0
    %853 = vmatpush1.bf16.msra.mxu0 %v832
    %854 = vmatprep.subr.bf16.mxu0 0
    %855 = vmatpush1.bf16.msra.mxu0 %v831
    %856 = vmatprep.subr.bf16.mxu0 0
    %857 = vmatpush2.bf16.msra.mxu0 0
    %858 = vmatprep.subr.bf16.mxu0 0
    %859 = vmatpush2.bf16.msra.mxu0 0
    %860 = vmatprep.subr.bf16.mxu0 0
    %861 = vmatpush2.bf16.msra.mxu0 0
    %862 = vmatprep.subr.bf16.mxu0 0
    %863 = vmatpush2.bf16.msra.mxu0 0
    %864 = vmatprep.subr.bf16.mxu0 0
    %865 = vmatpush2.bf16.msra.mxu0 0
    %866 = vmatprep.subr.bf16.mxu0 0
    %867 = vmatpush2.bf16.msra.mxu0 0
    %868 = vmatprep.subr.bf16.mxu0 0
    %869 = vmatpush2.bf16.msra.mxu0 0
    %870 = vmatprep.subr.bf16.mxu0 0
    %871 = vmatpush2.bf16.msra.mxu0 0
    %872 = vmatprep.mubr.bf16.mxu0 0
    %873 = vmatmul.mubr.bf16.gmra.mxu0 %v133
    %v874 = vpop.f32.mrf.mxu0
    %v875 = vadd.f32 %v838, %v874
    %v876 = vpop.f32.mrf.mxu0
    %v877 = vpop.f32.mrf.mxu0
    %v878 = vadd.f32 %v838, %v877
    %v879 = vpop.f32.mrf.mxu0
    %880 = vmatprep.mubr.bf16.mxu0 0
    %881 = vmatmul.mubr.bf16.gmra.mxu0 %v136
    %v882 = vpop.f32.mrf.mxu0
    %v883 = vadd.f32 %v838, %v882
    %v884 = vpop.f32.mrf.mxu0
    %v885 = vpop.f32.mrf.mxu0
    %v886 = vadd.f32 %v838, %v885
    %v887 = vpop.f32.mrf.mxu0
    %888 = vdwg.mxu0
    %889 = vst [vmem:[#allocation13] sm:$0xff] %v875
    %890 = vst [vmem:[#allocation13 + $0x8] sm:$0xff] %v878
    %891 = vst [vmem:[#allocation13 + $0x10] sm:$0xff] %v883
    %892 = vst [vmem:[#allocation13 + $0x18] sm:$0xff] %v886
    // Predicated region
    $region62: #{tpu_custom_call.1} parent=1 // pred_check
      _
    $region63: #{tpu_custom_call.1} parent=1 // pred_check_branch
      %894 = sbr.rel (0) target = $region65
    $region64: #{tpu_custom_call.1} parent=1 // pred_region
      %s896 = ssub.s32 512, 512
      %897 = vsyncadd [#allocation4], %s896
      %s898 = sshll.u32 [#allocation13], 4
      %s899 = int_to_ptr.vmem [resolvable:$true] %s898
      %904 = dma.vmem_to_hbm [thread:$0]  %s899, 512, %s9, [#allocation4], 128, 128, 8
    $region65: #{tpu_custom_call.1} parent=1 // pred_fallthru
      _
    // Predicated region
    $region66: #{tpu_custom_call.1} parent=1 // pred_check
      _
    $region67: #{tpu_custom_call.1} parent=1 // pred_check_branch
      %906 = sbr.rel (0) target = $region69
    $region68: #{tpu_custom_call.1} parent=1 // pred_region
      %907 = dma.done [#allocation4], 512
    $region69: #{tpu_custom_call.1} parent=1 // pred_fallthru
      _
    %908 = vsyncpa [#allocation3], 1
    %909 = vsyncpa [#allocation6], 1
    %910 = vsyncpa [#allocation9], 1
    %911 = vsyncpa [#allocation12], 1
    %912 = vsyncpa [#allocation4], 1

</llo_original>
